<compile_context>
chip_gen: v7x
topology: tpu7x:2x2x1
jax: 0.10.0
libtpu: 0.0.40
codegen_flags: <defaults>
</compile_context>

<pallas_src>
import functools

import jax
import jax.numpy as jnp
from jax.experimental import pallas as pl
from jax.experimental.pallas import tpu as pltpu


def _contrastive_loss_kernel(xr_ref, xc_ref, sqr_ref, sqc_ref, yr_ref, yc_ref,
                             o_ref, *, margin, n, tm, tn, need_mask):
    i = pl.program_id(0)
    j = pl.program_id(1)

    # Output tile is resident across the column (accumulation) axis.
    @pl.when(j == 0)
    def _():
        o_ref[...] = jnp.zeros_like(o_ref)

    # Gram tile on the MXU: contract the feature dim of both operands (no transpose).
    gram = jax.lax.dot_general(
        xr_ref[...], xc_ref[...],
        dimension_numbers=(((1,), (1,)), ((), ())),
        preferred_element_type=jnp.float32)                        # (TM, TN)

    # ||xi - xj||^2 = ||xi||^2 + ||xj||^2 - 2<xi, xj>, clamped >= 0 against cancellation.
    x_diff = sqr_ref[...] + sqc_ref[...] - 2.0 * gram              # (TM,1)+(1,TN)-(TM,TN)
    x_diff = jnp.maximum(x_diff, 0.0)

    # Fused hinge blend: same label -> x_diff, different label -> hinge term.
    y_same = yr_ref[...] == yc_ref[...]                            # (TM, TN) bool
    hinge = jnp.maximum(margin - x_diff, 0.0)
    loss = jnp.where(y_same, x_diff, hinge)

    if need_mask:  # static python bool: only emitted when N was padded up
        row_ids = i * tm + jax.lax.broadcasted_iota(jnp.int32, (tm, tn), 0)
        col_ids = j * tn + jax.lax.broadcasted_iota(jnp.int32, (tm, tn), 1)
        loss = jnp.where((row_ids < n) & (col_ids < n), loss, 0.0)

    o_ref[...] += loss


def _round_up(v, m):
    return (v + m - 1) // m * m


def contrastive_loss(x, y, margin=1.0, block=None):
    """x: (N, D) float, y: (N,) int labels. Returns scalar float32 loss."""
    n, d = x.shape

    # Tile size: 256 is MXU-friendly on v6e/v7x and a multiple of 128 for v5e;
    # small batches collapse to a single round-up-to-8 tile.
    if block is None:
        tile = 256 if n > 256 else _round_up(n, 8)
    else:
        tile = block
    assert tile % 8 == 0 and (tile % 128 == 0 or tile >= n), (
        "block must be a multiple of 8 and either a multiple of 128 or >= n")

    n_pad = _round_up(n, tile)
    need_mask = n_pad != n

    xf = x
    y32 = y.astype(jnp.int32)
    if need_mask:
        xf = jnp.pad(xf, ((0, n_pad - n), (0, 0)))
        y32 = jnp.pad(y32, ((0, n_pad - n),))

    # Squared norms precomputed once (O(N*D)); provided in both orientations so the
    # kernel never has to transpose a lane-width-1 vector.
    xf32 = xf.astype(jnp.float32)
    sq = jnp.sum(xf32 * xf32, axis=-1)
    sq_row = sq.reshape(n_pad, 1)
    sq_col = sq.reshape(1, n_pad)
    y_row = y32.reshape(n_pad, 1)
    y_col = y32.reshape(1, n_pad)

    grid = (n_pad // tile, n_pad // tile)

    kernel = functools.partial(
        _contrastive_loss_kernel,
        margin=float(margin), n=n, tm=tile, tn=tile, need_mask=need_mask)

    partials = pl.pallas_call(
        kernel,
        out_shape=jax.ShapeDtypeStruct((n_pad, tile), jnp.float32),
        grid_spec=pltpu.PrefetchScalarGridSpec(
            num_scalar_prefetch=0,
            grid=grid,
            in_specs=[
                pl.BlockSpec((tile, d), lambda i, j: (i, 0)),    # x row block
                pl.BlockSpec((tile, d), lambda i, j: (j, 0)),    # x col block
                pl.BlockSpec((tile, 1), lambda i, j: (i, 0)),    # ||x_i||^2 (sublane)
                pl.BlockSpec((1, tile), lambda i, j: (0, j)),    # ||x_j||^2 (lane)
                pl.BlockSpec((tile, 1), lambda i, j: (i, 0)),    # y_i (sublane)
                pl.BlockSpec((1, tile), lambda i, j: (0, j)),    # y_j (lane)
            ],
            out_specs=pl.BlockSpec((tile, tile), lambda i, j: (i, 0)),
        ),
        compiler_params=pltpu.CompilerParams(
            dimension_semantics=("parallel", "arbitrary"),
            vmem_limit_bytes=48 * 1024 * 1024,
        ),
    )(xf, xf, sq_row, sq_col, y_row, y_col)

    # Tiny final collapse + single compile-time scale (mean over n*n pairs, then /2).
    return jnp.sum(partials) * (0.5 / float(n * n))


def _reference(x, y, margin=1.0):
    # Pure-JAX reference mirroring the PyTorch module exactly.
    x_diff = jnp.sum((x[:, None, :] - x[None, :, :]) ** 2, axis=-1)
    y_mat = (y[:, None] != y[None, :]).astype(jnp.float32)
    loss = (1.0 - y_mat) * x_diff + y_mat * jnp.maximum(margin - x_diff, 0.0)
    return jnp.mean(loss) / 2.0


if __name__ == "__main__":
    key = jax.random.PRNGKey(0)
    kx1, ky1, kx2, ky2 = jax.random.split(key, 4)

    # Small case: single tile (matches the module's typical batch usage).
    n1, d1 = 8, 32
    x1 = jax.random.normal(kx1, (n1, d1), dtype=jnp.float32)
    y1 = jax.random.randint(ky1, (n1,), 0, 3, dtype=jnp.int32)
    out1 = jax.block_until_ready(contrastive_loss(x1, y1, margin=1.0))
    ref1 = jax.block_until_ready(_reference(x1, y1, margin=1.0))
    assert jnp.allclose(out1, ref1, rtol=1e-5, atol=1e-5), (out1, ref1)

    # Multi-tile case: exercises the 2D grid, column-axis accumulation,
    # megacore-parallel row axis, and the padded-edge mask.
    n2, d2 = 300, 64
    x2 = jax.random.normal(kx2, (n2, d2), dtype=jnp.float32)
    y2 = jax.random.randint(ky2, (n2,), 0, 5, dtype=jnp.int32)
    out2 = jax.block_until_ready(contrastive_loss(x2, y2, margin=1.0, block=128))
    ref2 = jax.block_until_ready(_reference(x2, y2, margin=1.0))
    assert jnp.allclose(out2, ref2, rtol=1e-4, atol=1e-4), (out2, ref2)

    print("KERNEL_OK")
</pallas_src>

<mosaic_0001>
module attributes {stable_mosaic.version = 11 : i64} {
  func.func @_contrastive_loss_kernel(%arg0: i32, %arg1: i32, %arg2: memref<8x32xf32, #tpu.memory_space<vmem>>, %arg3: memref<8x32xf32, #tpu.memory_space<vmem>>, %arg4: memref<8x1xf32, #tpu.memory_space<vmem>>, %arg5: memref<1x8xf32, #tpu.memory_space<vmem>>, %arg6: memref<8x1xi32, #tpu.memory_space<vmem>>, %arg7: memref<1x8xi32, #tpu.memory_space<vmem>>, %arg8: memref<8x8xf32, #tpu.memory_space<vmem>>) attributes {dimension_semantics = [#tpu.dimension_semantics<parallel>, #tpu.dimension_semantics<arbitrary>], iteration_bounds = array<i64: 1, 1>, scalar_prefetch = 0 : i64, scratch_operands = 0 : i64, tpu.core_type = #tpu.core_type<tc>, window_params = [{transform_indices = @transform_0, window_bounds = array<i64: 8, 32>}, {transform_indices = @transform_1, window_bounds = array<i64: 8, 32>}, {transform_indices = @transform_2, window_bounds = array<i64: 8, 1>}, {transform_indices = @transform_3, window_bounds = array<i64: 1, 8>}, {transform_indices = @transform_4, window_bounds = array<i64: 8, 1>}, {transform_indices = @transform_5, window_bounds = array<i64: 1, 8>}, {transform_indices = @transform_6, window_bounds = array<i64: 8, 8>}]} {
    %c0_i32 = arith.constant 0 : i32
    %0 = arith.cmpi eq, %arg1, %c0_i32 : i32
    %1 = arith.extui %0 : i1 to i32
    %c0_i32_0 = arith.constant 0 : i32
    %2 = arith.cmpi ne, %1, %c0_i32_0 : i32
    scf.if %2 {
      %cst_20 = arith.constant 0.000000e+00 : f32
      %29 = vector.broadcast %cst_20 : f32 to vector<8x8xf32>
      %c0_21 = arith.constant 0 : index
      %c0_22 = arith.constant 0 : index
      %30 = vector.load %arg8[%c0_21, %c0_22] : memref<8x8xf32, #tpu.memory_space<vmem>>, vector<8x8xf32>
      tpu.vector_store %arg8[%c0_21, %c0_22], %29 {strides = array<i32>} : memref<8x8xf32, #tpu.memory_space<vmem>>, vector<8x8xf32>,
    } else {
    }
    %c0 = arith.constant 0 : index
    %c0_1 = arith.constant 0 : index
    %3 = vector.load %arg2[%c0, %c0_1] : memref<8x32xf32, #tpu.memory_space<vmem>>, vector<8x32xf32>
    %c0_2 = arith.constant 0 : index
    %c0_3 = arith.constant 0 : index
    %4 = vector.load %arg3[%c0_2, %c0_3] : memref<8x32xf32, #tpu.memory_space<vmem>>, vector<8x32xf32>
    %cst = arith.constant dense<0.000000e+00> : vector<8x8xf32>
    %5 = tpu.matmul %3, %4, %cst {dimension_numbers = #tpu.dot_dimension_numbers<[1], [1], [0], [0], [0, 0, 1, 0], [], []>} : vector<8x32xf32>, vector<8x32xf32>, vector<8x8xf32> -> vector<8x8xf32>
    %c0_4 = arith.constant 0 : index
    %c0_5 = arith.constant 0 : index
    %6 = vector.load %arg4[%c0_4, %c0_5] : memref<8x1xf32, #tpu.memory_space<vmem>>, vector<8x1xf32>
    %c0_6 = arith.constant 0 : index
    %c0_7 = arith.constant 0 : index
    %7 = vector.load %arg5[%c0_6, %c0_7] : memref<1x8xf32, #tpu.memory_space<vmem>>, vector<1x8xf32>
    %8 = vector.broadcast %6 : vector<8x1xf32> to vector<8x8xf32>
    %9 = vector.broadcast %7 : vector<1x8xf32> to vector<8x8xf32>
    %10 = arith.addf %8, %9 : vector<8x8xf32>
    %cst_8 = arith.constant 2.000000e+00 : f32
    %11 = vector.broadcast %cst_8 : f32 to vector<8x8xf32>
    %12 = arith.mulf %11, %5 : vector<8x8xf32>
    %13 = arith.subf %10, %12 : vector<8x8xf32>
    %cst_9 = arith.constant 0.000000e+00 : f32
    %14 = vector.broadcast %cst_9 : f32 to vector<8x8xf32>
    %15 = arith.maximumf %13, %14 : vector<8x8xf32>
    %c0_10 = arith.constant 0 : index
    %c0_11 = arith.constant 0 : index
    %16 = vector.load %arg6[%c0_10, %c0_11] : memref<8x1xi32, #tpu.memory_space<vmem>>, vector<8x1xi32>
    %c0_12 = arith.constant 0 : index
    %c0_13 = arith.constant 0 : index
    %17 = vector.load %arg7[%c0_12, %c0_13] : memref<1x8xi32, #tpu.memory_space<vmem>>, vector<1x8xi32>
    %18 = vector.broadcast %16 : vector<8x1xi32> to vector<8x8xi32>
    %19 = vector.broadcast %17 : vector<1x8xi32> to vector<8x8xi32>
    %20 = arith.cmpi eq, %18, %19 : vector<8x8xi32>
    %cst_14 = arith.constant 1.000000e+00 : f32
    %21 = vector.broadcast %cst_14 : f32 to vector<8x8xf32>
    %22 = arith.subf %21, %15 : vector<8x8xf32>
    %cst_15 = arith.constant 0.000000e+00 : f32
    %23 = vector.broadcast %cst_15 : f32 to vector<8x8xf32>
    %24 = arith.maximumf %22, %23 : vector<8x8xf32>
    %25 = arith.select %20, %15, %24 : vector<8x8xi1>, vector<8x8xf32>
    %c0_16 = arith.constant 0 : index
    %c0_17 = arith.constant 0 : index
    %26 = vector.load %arg8[%c0_16, %c0_17] : memref<8x8xf32, #tpu.memory_space<vmem>>, vector<8x8xf32>
    %27 = arith.addf %26, %25 : vector<8x8xf32>
    %c0_18 = arith.constant 0 : index
    %c0_19 = arith.constant 0 : index
    %28 = vector.load %arg8[%c0_18, %c0_19] : memref<8x8xf32, #tpu.memory_space<vmem>>, vector<8x8xf32>
    tpu.vector_store %arg8[%c0_18, %c0_19], %27 {strides = array<i32>} : memref<8x8xf32, #tpu.memory_space<vmem>>, vector<8x8xf32>,
    return
  }
  func.func @transform_0(%arg0: i32, %arg1: i32) -> (i32, i32) {
    %c0_i32 = arith.constant 0 : i32
    %c0_i32_0 = arith.constant 0 : i32
    return %arg0, %c0_i32 : i32, i32
  }
  func.func @transform_1(%arg0: i32, %arg1: i32) -> (i32, i32) {
    %c0_i32 = arith.constant 0 : i32
    %c0_i32_0 = arith.constant 0 : i32
    return %arg1, %c0_i32 : i32, i32
  }
  func.func @transform_2(%arg0: i32, %arg1: i32) -> (i32, i32) {
    %c0_i32 = arith.constant 0 : i32
    %c0_i32_0 = arith.constant 0 : i32
    return %arg0, %c0_i32 : i32, i32
  }
  func.func @transform_3(%arg0: i32, %arg1: i32) -> (i32, i32) {
    %c0_i32 = arith.constant 0 : i32
    %c0_i32_0 = arith.constant 0 : i32
    return %c0_i32, %arg1 : i32, i32
  }
  func.func @transform_4(%arg0: i32, %arg1: i32) -> (i32, i32) {
    %c0_i32 = arith.constant 0 : i32
    %c0_i32_0 = arith.constant 0 : i32
    return %arg0, %c0_i32 : i32, i32
  }
  func.func @transform_5(%arg0: i32, %arg1: i32) -> (i32, i32) {
    %c0_i32 = arith.constant 0 : i32
    %c0_i32_0 = arith.constant 0 : i32
    return %c0_i32, %arg1 : i32, i32
  }
  func.func @transform_6(%arg0: i32, %arg1: i32) -> (i32, i32) {
    %c0_i32 = arith.constant 0 : i32
    %c0_i32_0 = arith.constant 0 : i32
    return %arg0, %c0_i32 : i32, i32
  }
}

</mosaic_0001>

<llo_original>
// kernel: tpu_custom_call.1
$region0: #{tpu_custom_call.1}
  #allocation0 [shape = 'u32[]', space=smem, size = 0x4, offset = 0x4, fixed_abs, tag = 'smem constant byte address 0x4 - core index']
  #allocation1 [shape = 'u32[144,128]{1,0:T(1,128)}', space=vmem, size = 0x12000, scoped, tag = 'internal scratch']
  %s0 = inlined_call_operand.vmem [shape: f32[8,32], index: 0, kind: input, shape index: {}]
  %s1 = inlined_call_operand.vmem [shape: f32[8,32], index: 1, kind: input, shape index: {}]
  %s2 = inlined_call_operand.vmem [shape: f32[8,1], index: 2, kind: input, shape index: {}]
  %s3 = inlined_call_operand.vmem [shape: f32[1,8], index: 3, kind: input, shape index: {}]
  %s4 = inlined_call_operand.vmem [shape: s32[8,1], index: 4, kind: input, shape index: {}]
  %s5 = inlined_call_operand.vmem [shape: s32[1,8], index: 5, kind: input, shape index: {}]
  %s6 = inlined_call_operand.hbm [shape: f32[8,8], index: 6, kind: output, shape index: {}]
  %s7 = sld [smem:[#allocation0]]
  $region38: #{tpu_custom_call.1} parent=0
    _
  %s9 = ssub.s32 1, %s7
  %s10 = scalar_select 0, %s9, %s7
  $region1: #{tpu_custom_call.1} parent=0
    #allocation2 [shape = 'u8[4096]{0}', space=vmem, size = 0x1000, scoped, tag = 'output window, operand 0, single buffered']
    #allocation3 [shape = 's32[1]{0}', space=sflag, size = 0x4, scoped, tag = 'scoped memory for tpu_custom_call.1']
    %11 = vsyncpa [#allocation3], 0
    // Predicated region
    $region2: #{tpu_custom_call.1} parent=1 // pred_check
      _
    $region3: #{tpu_custom_call.1} parent=1 // pred_check_branch
      %13 = sbr.rel (0) target = $region5
    $region4: #{tpu_custom_call.1} parent=1 // pred_region
      _
    $region5: #{tpu_custom_call.1} parent=1 // pred_fallthru
      _
    // Predicated region
    $region6: #{tpu_custom_call.1} parent=1 // pred_check
      _
    $region7: #{tpu_custom_call.1} parent=1 // pred_check_branch
      %15 = sbr.rel (0) target = $region9
    $region8: #{tpu_custom_call.1} parent=1 // pred_region
      _
    $region9: #{tpu_custom_call.1} parent=1 // pred_fallthru
      _
    // Predicated region
    $region10: #{tpu_custom_call.1} parent=1 // pred_check
      _
    $region11: #{tpu_custom_call.1} parent=1 // pred_check_branch
      %17 = sbr.rel (0) target = $region13
    $region12: #{tpu_custom_call.1} parent=1 // pred_region
      _
    $region13: #{tpu_custom_call.1} parent=1 // pred_fallthru
      _
    // Predicated region
    $region14: #{tpu_custom_call.1} parent=1 // pred_check
      _
    $region15: #{tpu_custom_call.1} parent=1 // pred_check_branch
      %19 = sbr.rel (0) target = $region17
    $region16: #{tpu_custom_call.1} parent=1 // pred_region
      _
    $region17: #{tpu_custom_call.1} parent=1 // pred_fallthru
      _
    // Predicated region
    $region18: #{tpu_custom_call.1} parent=1 // pred_check
      _
    $region19: #{tpu_custom_call.1} parent=1 // pred_check_branch
      %21 = sbr.rel (0) target = $region21
    $region20: #{tpu_custom_call.1} parent=1 // pred_region
      _
    $region21: #{tpu_custom_call.1} parent=1 // pred_fallthru
      _
    // Predicated region
    $region22: #{tpu_custom_call.1} parent=1 // pred_check
      _
    $region23: #{tpu_custom_call.1} parent=1 // pred_check_branch
      %23 = sbr.rel (0) target = $region25
    $region24: #{tpu_custom_call.1} parent=1 // pred_region
      _
    $region25: #{tpu_custom_call.1} parent=1 // pred_fallthru
      _
    %p24 = scmp.eq.s32.totalorder 0, 0
    // Predicated region
    $region26: #{tpu_custom_call.1} parent=1 // pred_check
      %p25 = pneg %p24
    $region27: #{tpu_custom_call.1} parent=1 // pred_check_branch
      %27 = sbr.rel (%p25) target = $region29
    $region28: #{tpu_custom_call.1} parent=1 // pred_region
      %vm28 = vcmask 64512
      %29 = vst.msk [vmem:[#allocation2] sm:$0xff] %vm28, 0.0
    $region29: #{tpu_custom_call.1} parent=1 // pred_fallthru
      _
    %v30 = vld [vmem:[%s0] sm:$0xff]
    %v31 = vld [vmem:[%s1] sm:$0xff]
    %vm32 = vcmask 261120
    %v34 = vsel %vm32, %v30, 0
    %v37 = vsel %vm32, %v31, 0
    %39 = vmatprep.subr.mxu0 0.0
    %40 = vmatpush1.xpose.msra.mxu0 %v37
    %41 = vmatprep.subr.mxu0 0.0
    %42 = vmatpush1.xpose.msra.mxu0 0.0
    %43 = vmatprep.subr.mxu0 0.0
    %44 = vmatpush1.xpose.msra.mxu0 0.0
    %45 = vmatprep.subr.mxu0 0.0
    %46 = vmatpush1.xpose.msra.mxu0 0.0
    %47 = vmatprep.subr.mxu0 0.0
    %48 = vmatpush1.xpose.msra.mxu0 0.0
    %49 = vmatprep.subr.mxu0 0.0
    %50 = vmatpush1.xpose.msra.mxu0 0.0
    %51 = vmatprep.subr.mxu0 0.0
    %52 = vmatpush1.xpose.msra.mxu0 0.0
    %53 = vmatprep.subr.mxu0 0.0
    %54 = vmatpush1.xpose.msra.mxu0 0.0
    %55 = vmatprep.subr.mxu0 0.0
    %56 = vmatpush1.xpose.msra.mxu0 0.0
    %57 = vmatprep.subr.mxu0 0.0
    %58 = vmatpush1.xpose.msra.mxu0 0.0
    %59 = vmatprep.subr.mxu0 0.0
    %60 = vmatpush1.xpose.msra.mxu0 0.0
    %61 = vmatprep.subr.mxu0 0.0
    %62 = vmatpush1.xpose.msra.mxu0 0.0
    %63 = vmatprep.subr.mxu0 0.0
    %64 = vmatpush1.xpose.msra.mxu0 0.0
    %65 = vmatprep.subr.mxu0 0.0
    %66 = vmatpush1.xpose.msra.mxu0 0.0
    %67 = vmatprep.subr.mxu0 0.0
    %68 = vmatpush1.xpose.msra.mxu0 0.0
    %69 = vmatprep.subr.mxu0 0.0
    %70 = vmatpush1.xpose.msra.mxu0 0.0
    %71 = vmatprep.subr.mxu0 0.0
    %72 = vmatpush1.xpose.msra.mxu0 0.0
    %73 = vmatprep.subr.mxu0 0.0
    %74 = vmatpush1.xpose.msra.mxu0 0.0
    %75 = vmatprep.subr.mxu0 0.0
    %76 = vmatpush1.xpose.msra.mxu0 0.0
    %77 = vmatprep.subr.mxu0 0.0
    %78 = vmatpush1.xpose.msra.mxu0 0.0
    %79 = vmatprep.subr.mxu0 0.0
    %80 = vmatpush1.xpose.msra.mxu0 0.0
    %81 = vmatprep.subr.mxu0 0.0
    %82 = vmatpush1.xpose.msra.mxu0 0.0
    %83 = vmatprep.subr.mxu0 0.0
    %84 = vmatpush1.xpose.msra.mxu0 0.0
    %85 = vmatprep.subr.mxu0 0.0
    %86 = vmatpush1.xpose.msra.mxu0 0.0
    %87 = vmatprep.subr.mxu0 0.0
    %88 = vmatpush1.xpose.msra.mxu0 0.0
    %89 = vmatprep.subr.mxu0 0.0
    %90 = vmatpush1.xpose.msra.mxu0 0.0
    %91 = vmatprep.subr.mxu0 0.0
    %92 = vmatpush1.xpose.msra.mxu0 0.0
    %93 = vmatprep.subr.mxu0 0.0
    %94 = vmatpush1.xpose.msra.mxu0 0.0
    %95 = vmatprep.subr.mxu0 0.0
    %96 = vmatpush1.xpose.msra.mxu0 0.0
    %97 = vmatprep.subr.mxu0 0.0
    %98 = vmatpush1.xpose.msra.mxu0 0.0
    %99 = vmatprep.subr.mxu0 0.0
    %100 = vmatpush1.xpose.msra.mxu0 0.0
    %101 = vmatprep.subr.mxu0 0.0
    %102 = vmatpush1.xpose.msra.mxu0 0.0
    %103 = vmatprep.mubr.f32.mxu0 0.0
    %104 = vmatmul.mubr.f32.gmra.mrb[0].mxu0 %v34
    %v105 = vpop.f32.mrb[0].mxu0
    %v106 = vadd.f32 0.0, %v105
    %v107 = vpop.f32.mrb[0].mxu0
    %108 = vdwg.mxu0
    %v109 = vld [vmem:[%s2] sm:$0xff]
    %v110 = vld [vmem:[%s3] sm:$0x1]
    %112 = vset.pattern.permute.xlu0 0
    %113 = vperm.xlu0 %112, %v109
    %v114 = vpop.permute.xlu0 %113
    %v117 = vlaneseq
    %v118 = vshrl.u32 %v117, 7
    %v119 = vsub.s32 0, %v118
    %v120 = vrot.slane %v110, %v119
    %v122 = vadd.f32 %v114, %v120
    %v123 = vmul.f32 %v106, 2.0
    %v124 = vsub.f32 %v122, %v123
    %v125 = vmax.f32 %v124, 0.0
    %v126 = vld [vmem:[%s4] sm:$0xff]
    %v127 = vld [vmem:[%s5] sm:$0x1]
    %128 = vset.pattern.permute.xlu0 0
    %129 = vperm.xlu0 %128, %v126
    %v130 = vpop.permute.xlu0 %129
    %v131 = vlaneseq
    %v132 = vshrl.u32 %v131, 7
    %v133 = vsub.s32 0, %v132
    %v134 = vrot.slane %v127, %v133
    %vm135 = vcmp.eq.s32.totalorder %v130, %v134
    %v136 = vsub.f32 1.0, %v125
    %v137 = vmax.f32 %v136, 0.0
    %v138 = vsel %vm135, %v125, %v137
    %v139 = vld [vmem:[#allocation2] sm:$0xff]
    %v140 = vadd.f32 %v139, %v138
    %vm141 = vcmask 64512
    %142 = vst.msk [vmem:[#allocation2] sm:$0xff] %vm141, %v140
    // Predicated region
    $region30: #{tpu_custom_call.1} parent=1 // pred_check
      _
    $region31: #{tpu_custom_call.1} parent=1 // pred_check_branch
      %144 = sbr.rel (0) target = $region33
    $region32: #{tpu_custom_call.1} parent=1 // pred_region
      %s146 = ssub.s32 128, 128
      %147 = vsyncadd [#allocation3], %s146
      %s149 = sshll.u32 [#allocation2], 4
      %s150 = int_to_ptr.vmem [resolvable:$true] %s149
      %152 = dma.vmem_to_hbm [thread:$0]  %s150, 128, %s6, [#allocation3]
    $region33: #{tpu_custom_call.1} parent=1 // pred_fallthru
      _
    // Predicated region
    $region34: #{tpu_custom_call.1} parent=1 // pred_check
      _
    $region35: #{tpu_custom_call.1} parent=1 // pred_check_branch
      %154 = sbr.rel (0) target = $region37
    $region36: #{tpu_custom_call.1} parent=1 // pred_region
      %155 = dma.done [#allocation3], 128
    $region37: #{tpu_custom_call.1} parent=1 // pred_fallthru
      _
    %156 = vsyncpa [#allocation3], 1

</llo_original>
